<compile_context>
chip_gen: v7x
topology: tpu7x:2x2x1
jax: 0.10.0
libtpu: 0.0.40
codegen_flags: <defaults>
</compile_context>

<pallas_src>
import functools

import jax
import jax.numpy as jnp
from jax.experimental import pallas as pl
from jax.experimental.pallas import tpu as pltpu


# --------------------------------------------------------------------------- #
# Fused kernel: attention -> context vector -> L bidirectional GRU layers.
# Single program (no grid); every operand fits comfortably in VMEM.
# --------------------------------------------------------------------------- #
def _fused_kernel(ctx_ref, wc_ref, hq2p_ref, wcomb_ref, bcomb_ref,
                  wih_ref, bih_ref, out_ref, *, H, L, GP):
    f32 = jnp.float32
    H2 = 2 * H          # both directions of one gate
    G = 3 * GP          # padded width of one layer's packed gates [r|z|n]

    # ---------------- attention ----------------
    # score[s, b] = wc . ctx[s, b, :]   (hidden term + bias are shift-invariant
    # under the dim=0 softmax and are dropped exactly)
    ctx = ctx_ref[...]                                          # (S, B, E)
    wc = wc_ref[...]                                            # (1, E)
    score = jnp.sum(ctx * wc[None, :, :], axis=-1, keepdims=True)   # (S, B, 1)

    # softmax over the sequence axis (torch Softmax(dim=0)); exact normalisation
    m = jnp.max(score, axis=0, keepdims=True)                   # (1, B, 1)
    e = jnp.exp(score - m)                                      # (S, B, 1)
    denom = jnp.sum(e, axis=0, keepdims=True)                   # (1, B, 1)
    energy = e / denom                                          # (S, B, 1)

    # cv[b, :] = sum_s energy[s, b] * ctx[s, b, :]   (leading-axis VPU reduce)
    cv = jnp.sum(energy * ctx, axis=0)                          # (B, E)

    # ------------- bidirectional multi-layer GRU, seq_len == 1 -------------
    hq2p = hq2p_ref[...]                                        # (B, GP): [hq | hq | 0]
    hq = hq2p[:, :H]                                            # (B, H)

    # ONE wide MXU matmul: [cv | hq] @ [[w_ih0, 0], [0, w_hh_all]]
    #   -> [ gi_layer0 | gh_layer0 | ... | gh_layer{L-1} ]
    x0 = jnp.concatenate([cv, hq], axis=1)                      # (B, E+H)
    g_all = (jnp.dot(x0, wcomb_ref[...], preferred_element_type=f32)
             + bcomb_ref[...])                                  # (B, (L+1)*G)

    gi = g_all[:, :G]                                           # layer-0 input gates
    for l in range(L):
        gh = g_all[:, (l + 1) * G:(l + 2) * G]                  # (B, G), 128-aligned

        # PyTorch gate order (r, z, n); both directions in one padded vreg block.
        r = jax.nn.sigmoid(gi[:, :GP] + gh[:, :GP])
        z = jax.nn.sigmoid(gi[:, GP:2 * GP] + gh[:, GP:2 * GP])
        n = jnp.tanh(gi[:, 2 * GP:] + r * gh[:, 2 * GP:])       # b_hn inside r*(...)
        h_new = n + z * (hq2p - n)                              # == (1-z)*n + z*h; pad lanes stay 0

        # in-place, per-layer store into the lane-dense output slab
        out_ref[:, l * H2:(l + 1) * H2] = h_new[:, :H2].astype(out_ref.dtype)

        if l + 1 < L:                                           # next layer's input gates
            gi = (jnp.dot(h_new, wih_ref[l], preferred_element_type=f32)
                  + bih_ref[l])                                 # (B, G)
        # TODO(synk): inter-layer dropout (torch training mode only) is omitted.


# --------------------------------------------------------------------------- #
# Forward wrapper (mirrors AttnBiGRU.forward). One pallas_call per forward.
# --------------------------------------------------------------------------- #
def attn_bigru_forward(params, context, hidden_outputs, hidden_question, num_layers):
    del hidden_outputs                     # unused in the torch forward as well
    S, B, E = context.shape
    H = hidden_question.shape[2]
    L = num_layers
    GP = (2 * H + 127) // 128 * 128        # gate-pair width padded to 128 lanes

    hq = hidden_question[0]                                      # (B, H)
    # h0 for both directions, zero-padded to the gate-pair width (done at XLA level)
    hq2p = jnp.pad(jnp.concatenate([hq, hq], axis=1), ((0, 0), (0, GP - 2 * H)))

    kernel = functools.partial(_fused_kernel, H=H, L=L, GP=GP)
    vmem = pl.BlockSpec(memory_space=pltpu.MemorySpace.VMEM)

    slab = pl.pallas_call(
        kernel,
        out_shape=jax.ShapeDtypeStruct((B, 2 * L * H), context.dtype),
        in_specs=[vmem] * 7,
        out_specs=vmem,
    )(context, params["attn_wc"], hq2p, params["w_comb"], params["b_comb"],
      params["w_ih_hi"], params["b_ih_hi"])

    # slab[b, (2*l + d)*H : ...] = h_{layer l, direction d}[b]
    hidden = slab.reshape(B, 2 * L, H).transpose(1, 0, 2)        # (2L, B, H), torch order
    out = slab[:, 2 * (L - 1) * H:][None]                        # (1, B, 2H): last layer
    return out, hidden


# --------------------------------------------------------------------------- #
# Deterministic parameter init (torch-layout shapes) + one-time packing.
# All transposes / gate stacking / padding / block-stacking happen HERE.
# --------------------------------------------------------------------------- #
def init_params(key, embedding_dim, hidden_size, num_layers):
    E, H, L = embedding_dim, hidden_size, num_layers
    k_scale = 1.0 / jnp.sqrt(jnp.float32(H))
    n_gru = L * 2 * 4
    keys = jax.random.split(key, 2 + n_gru)

    params = {
        "attn_w": jax.random.uniform(keys[0], (1, H + E), jnp.float32, -k_scale, k_scale),
        "attn_b": jax.random.uniform(keys[1], (1,), jnp.float32, -k_scale, k_scale),
        "w_ih": {}, "w_hh": {}, "b_ih": {}, "b_hh": {},
    }
    idx = 2
    for layer in range(L):
        in_size = E if layer == 0 else 2 * H
        for direction in range(2):
            params["w_ih"][(layer, direction)] = jax.random.uniform(
                keys[idx + 0], (3 * H, in_size), jnp.float32, -k_scale, k_scale)
            params["w_hh"][(layer, direction)] = jax.random.uniform(
                keys[idx + 1], (3 * H, H), jnp.float32, -k_scale, k_scale)
            params["b_ih"][(layer, direction)] = jax.random.uniform(
                keys[idx + 2], (3 * H,), jnp.float32, -k_scale, k_scale)
            params["b_hh"][(layer, direction)] = jax.random.uniform(
                keys[idx + 3], (3 * H,), jnp.float32, -k_scale, k_scale)
            idx += 4
    return params


def pack_params(raw, embedding_dim, hidden_size, num_layers):
    """Transpose / direction-stack / 128-lane-pad / block-stack weights once."""
    E, H, L = embedding_dim, hidden_size, num_layers
    H2 = 2 * H
    GP = (H2 + 127) // 128 * 128          # gate-pair width padded to 128 lanes
    G = 3 * GP
    f32 = jnp.float32

    def pack_gates(w0, w1):
        # (3H, in) torch layout x2  ->  (in, 3*GP): [r0 r1 pad | z0 z1 pad | n0 n1 pad]
        w0t, w1t = w0.T, w1.T
        blocks = []
        for g in range(3):
            blk = jnp.concatenate([w0t[:, g * H:(g + 1) * H],
                                   w1t[:, g * H:(g + 1) * H]], axis=1)
            blocks.append(jnp.pad(blk, ((0, 0), (0, GP - H2))))
        return jnp.concatenate(blocks, axis=1)

    def pack_bias(b0, b1):
        blocks = []
        for g in range(3):
            blk = jnp.concatenate([b0[g * H:(g + 1) * H], b1[g * H:(g + 1) * H]])
            blocks.append(jnp.pad(blk, (0, GP - H2)))
        return jnp.concatenate(blocks)[None, :]                  # (1, 3*GP)

    w_ih0 = pack_gates(raw["w_ih"][(0, 0)], raw["w_ih"][(0, 1)])  # (E, G)
    b_ih0 = pack_bias(raw["b_ih"][(0, 0)], raw["b_ih"][(0, 1)])   # (1, G)
    w_hh = [pack_gates(raw["w_hh"][(l, 0)], raw["w_hh"][(l, 1)]) for l in range(L)]  # (H, G)
    b_hh = [pack_bias(raw["b_hh"][(l, 0)], raw["b_hh"][(l, 1)]) for l in range(L)]

    # [cv | hq] @ w_comb -> [gi_layer0 | gh_layer0 | ... | gh_layer{L-1}] (one matmul)
    top = jnp.concatenate([w_ih0] + [jnp.zeros((E, G), f32)] * L, axis=1)   # (E, (L+1)G)
    bot = jnp.concatenate([jnp.zeros((H, G), f32)] + w_hh, axis=1)          # (H, (L+1)G)
    w_comb = jnp.concatenate([top, bot], axis=0)                            # (E+H, (L+1)G)
    b_comb = jnp.concatenate([b_ih0] + b_hh, axis=1)                        # (1, (L+1)G)

    # Input-gate weights for layers 1..L-1 (their input is the previous layer's
    # padded (B, GP) output, so rows are zero-padded from 2H to GP).
    if L > 1:
        w_ih_hi = jnp.stack(
            [jnp.pad(pack_gates(raw["w_ih"][(l, 0)], raw["w_ih"][(l, 1)]),
                     ((0, GP - H2), (0, 0))) for l in range(1, L)])          # (L-1, GP, G)
        b_ih_hi = jnp.stack(
            [pack_bias(raw["b_ih"][(l, 0)], raw["b_ih"][(l, 1)]) for l in range(1, L)])
    else:
        w_ih_hi = jnp.zeros((1, GP, G), f32)
        b_ih_hi = jnp.zeros((1, 1, G), f32)

    return {
        # torch cat order is (hidden_question, context): last E cols multiply ctx.
        # The first-H (hidden) half and the bias are dropped: they are constant
        # per batch column and cancel exactly under the dim=0 softmax.
        "attn_wc": raw["attn_w"][:, H:],                 # (1, E)
        "w_comb": w_comb, "b_comb": b_comb,              # fused layer-0 + hidden gates
        "w_ih_hi": w_ih_hi, "b_ih_hi": b_ih_hi,          # per-layer input gates, l >= 1
    }


# --------------------------------------------------------------------------- #
# Pure-JAX reference (uses the raw torch-layout params) for correctness check.
# --------------------------------------------------------------------------- #
def _ref_forward(params, context, hidden_question, num_layers):
    S, B, E = context.shape
    H = hidden_question.shape[2]
    hq = hidden_question[0]
    h_rep = jnp.broadcast_to(hq, (S, B, H))
    cat = jnp.concatenate([h_rep, context], axis=2)
    score = cat @ params["attn_w"].T + params["attn_b"]          # (S, B, 1)
    energy = jax.nn.softmax(score, axis=0)
    cv = jnp.einsum("sb,sbe->be", energy[..., 0], context)       # (B, E)
    layer_in = cv
    hiddens = []
    for layer in range(num_layers):
        outs = []
        for direction in range(2):
            w_ih = params["w_ih"][(layer, direction)]
            w_hh = params["w_hh"][(layer, direction)]
            gi = layer_in @ w_ih.T + params["b_ih"][(layer, direction)]
            gh = hq @ w_hh.T + params["b_hh"][(layer, direction)]
            i_r, i_z, i_n = jnp.split(gi, 3, axis=1)
            h_r, h_z, h_n = jnp.split(gh, 3, axis=1)
            r = jax.nn.sigmoid(i_r + h_r)
            z = jax.nn.sigmoid(i_z + h_z)
            n = jnp.tanh(i_n + r * h_n)
            hn = (1.0 - z) * n + z * hq
            outs.append(hn)
            hiddens.append(hn)
        layer_in = jnp.concatenate(outs, axis=1)
    return layer_in[None], jnp.stack(hiddens, axis=0)


if __name__ == "__main__":
    embedding_dim, hidden_size, num_layers = 16, 32, 2
    seq_len, batch = 8, 2

    root = jax.random.PRNGKey(0)
    kp, kc, kh, kq = jax.random.split(root, 4)

    raw = init_params(kp, embedding_dim, hidden_size, num_layers)
    packed = pack_params(raw, embedding_dim, hidden_size, num_layers)

    context = jax.random.normal(kc, (seq_len, batch, embedding_dim), jnp.float32)
    hidden_outputs = jax.random.normal(kh, (seq_len, batch, 2 * hidden_size), jnp.float32)  # unused
    hidden_question = jax.random.normal(kq, (1, batch, hidden_size), jnp.float32)

    out, hidden = attn_bigru_forward(packed, context, hidden_outputs,
                                     hidden_question, num_layers)
    jax.block_until_ready((out, hidden))

    assert out.shape == (1, batch, 2 * hidden_size)
    assert hidden.shape == (2 * num_layers, batch, hidden_size)

    ref_out, ref_hidden = _ref_forward(raw, context, hidden_question, num_layers)
    assert jnp.allclose(out, ref_out, atol=1e-4, rtol=1e-4)
    assert jnp.allclose(hidden, ref_hidden, atol=1e-4, rtol=1e-4)

    print("KERNEL_OK")
</pallas_src>

<mosaic_0001>
module attributes {stable_mosaic.version = 11 : i64} {
  func.func @_fused_kernel(%arg0: memref<8x2x16xf32, #tpu.memory_space<vmem>>, %arg1: memref<1x16xf32, #tpu.memory_space<vmem>>, %arg2: memref<2x128xf32, #tpu.memory_space<vmem>>, %arg3: memref<48x1152xf32, #tpu.memory_space<vmem>>, %arg4: memref<1x1152xf32, #tpu.memory_space<vmem>>, %arg5: memref<1x128x384xf32, #tpu.memory_space<vmem>>, %arg6: memref<1x1x384xf32, #tpu.memory_space<vmem>>, %arg7: memref<2x128xf32, #tpu.memory_space<vmem>>) attributes {dimension_semantics = [], scalar_prefetch = 0 : i64, scratch_operands = 0 : i64, tpu.core_type = #tpu.core_type<tc>} {
    %c0 = arith.constant 0 : index
    %c0_0 = arith.constant 0 : index
    %c0_1 = arith.constant 0 : index
    %0 = vector.load %arg0[%c0, %c0_0, %c0_1] : memref<8x2x16xf32, #tpu.memory_space<vmem>>, vector<8x2x16xf32>
    %c0_2 = arith.constant 0 : index
    %c0_3 = arith.constant 0 : index
    %1 = vector.load %arg1[%c0_2, %c0_3] : memref<1x16xf32, #tpu.memory_space<vmem>>, vector<1x16xf32>
    %2 = vector.shape_cast %1 : vector<1x16xf32> to vector<1x1x16xf32>
    %3 = vector.broadcast %2 : vector<1x1x16xf32> to vector<8x2x16xf32>
    %4 = arith.mulf %0, %3 : vector<8x2x16xf32>
    %cst = arith.constant dense<0.000000e+00> : vector<8x2xf32>
    %5 = vector.multi_reduction <add>, %4, %cst [2] : vector<8x2x16xf32> to vector<8x2xf32>
    %6 = vector.shape_cast %5 : vector<8x2xf32> to vector<8x2x1xf32>
    %cst_4 = arith.constant dense<0xFF800000> : vector<2x1xf32>
    %7 = vector.multi_reduction <maximumf>, %6, %cst_4 [0] : vector<8x2x1xf32> to vector<2x1xf32>
    %8 = vector.shape_cast %7 : vector<2x1xf32> to vector<1x2x1xf32>
    %9 = vector.broadcast %8 : vector<1x2x1xf32> to vector<8x2x1xf32>
    %10 = arith.subf %6, %9 : vector<8x2x1xf32>
    %11 = math.exp %10 : vector<8x2x1xf32>
    %cst_5 = arith.constant dense<0.000000e+00> : vector<2x1xf32>
    %12 = vector.multi_reduction <add>, %11, %cst_5 [0] : vector<8x2x1xf32> to vector<2x1xf32>
    %13 = vector.shape_cast %12 : vector<2x1xf32> to vector<1x2x1xf32>
    %14 = vector.broadcast %13 : vector<1x2x1xf32> to vector<8x2x1xf32>
    %15 = arith.divf %11, %14 : vector<8x2x1xf32>
    %16 = vector.broadcast %15 : vector<8x2x1xf32> to vector<8x2x16xf32>
    %17 = arith.mulf %16, %0 : vector<8x2x16xf32>
    %cst_6 = arith.constant dense<0.000000e+00> : vector<2x16xf32>
    %18 = vector.multi_reduction <add>, %17, %cst_6 [0] : vector<8x2x16xf32> to vector<2x16xf32>
    %c0_7 = arith.constant 0 : index
    %c0_8 = arith.constant 0 : index
    %19 = vector.load %arg2[%c0_7, %c0_8] : memref<2x128xf32, #tpu.memory_space<vmem>>, vector<2x128xf32>
    %20 = vector.extract_strided_slice %19 {offsets = [0, 0], sizes = [2, 32], strides = [1, 1]} : vector<2x128xf32> to vector<2x32xf32>
    %21 = tpu.concatenate %18, %20 in 1 : vector<2x16xf32>, vector<2x32xf32> -> vector<2x48xf32>
    %c0_9 = arith.constant 0 : index
    %c0_10 = arith.constant 0 : index
    %22 = vector.load %arg3[%c0_9, %c0_10] : memref<48x1152xf32, #tpu.memory_space<vmem>>, vector<48x1152xf32>
    %cst_11 = arith.constant dense<0.000000e+00> : vector<2x1152xf32>
    %23 = tpu.matmul %21, %22, %cst_11 {dimension_numbers = #tpu.dot_dimension_numbers<[1], [0], [0], [1], [0, 0, 1, 1], [], []>} : vector<2x48xf32>, vector<48x1152xf32>, vector<2x1152xf32> -> vector<2x1152xf32>
    %c0_12 = arith.constant 0 : index
    %c0_13 = arith.constant 0 : index
    %24 = vector.load %arg4[%c0_12, %c0_13] : memref<1x1152xf32, #tpu.memory_space<vmem>>, vector<1x1152xf32>
    %25 = vector.broadcast %24 : vector<1x1152xf32> to vector<2x1152xf32>
    %26 = arith.addf %23, %25 : vector<2x1152xf32>
    %27 = vector.extract_strided_slice %26 {offsets = [0, 0], sizes = [2, 384], strides = [1, 1]} : vector<2x1152xf32> to vector<2x384xf32>
    %28 = vector.extract_strided_slice %26 {offsets = [0, 384], sizes = [2, 384], strides = [1, 1]} : vector<2x1152xf32> to vector<2x384xf32>
    %29 = vector.extract_strided_slice %27 {offsets = [0, 0], sizes = [2, 128], strides = [1, 1]} : vector<2x384xf32> to vector<2x128xf32>
    %30 = vector.extract_strided_slice %28 {offsets = [0, 0], sizes = [2, 128], strides = [1, 1]} : vector<2x384xf32> to vector<2x128xf32>
    %31 = arith.addf %29, %30 : vector<2x128xf32>
    %32 = arith.negf %31 : vector<2x128xf32>
    %33 = math.exp %32 : vector<2x128xf32>
    %cst_14 = arith.constant 1.000000e+00 : f32
    %34 = vector.broadcast %cst_14 : f32 to vector<2x128xf32>
    %35 = arith.addf %34, %33 : vector<2x128xf32>
    %36 = arith.divf %34, %35 : vector<2x128xf32>
    %37 = vector.extract_strided_slice %27 {offsets = [0, 128], sizes = [2, 128], strides = [1, 1]} : vector<2x384xf32> to vector<2x128xf32>
    %38 = vector.extract_strided_slice %28 {offsets = [0, 128], sizes = [2, 128], strides = [1, 1]} : vector<2x384xf32> to vector<2x128xf32>
    %39 = arith.addf %37, %38 : vector<2x128xf32>
    %40 = arith.negf %39 : vector<2x128xf32>
    %41 = math.exp %40 : vector<2x128xf32>
    %cst_15 = arith.constant 1.000000e+00 : f32
    %42 = vector.broadcast %cst_15 : f32 to vector<2x128xf32>
    %43 = arith.addf %42, %41 : vector<2x128xf32>
    %44 = arith.divf %42, %43 : vector<2x128xf32>
    %45 = vector.extract_strided_slice %27 {offsets = [0, 256], sizes = [2, 128], strides = [1, 1]} : vector<2x384xf32> to vector<2x128xf32>
    %46 = vector.extract_strided_slice %28 {offsets = [0, 256], sizes = [2, 128], strides = [1, 1]} : vector<2x384xf32> to vector<2x128xf32>
    %47 = arith.mulf %36, %46 : vector<2x128xf32>
    %48 = arith.addf %45, %47 : vector<2x128xf32>
    %49 = math.tanh %48 : vector<2x128xf32>
    %50 = arith.subf %19, %49 : vector<2x128xf32>
    %51 = arith.mulf %44, %50 : vector<2x128xf32>
    %52 = arith.addf %49, %51 : vector<2x128xf32>
    %53 = vector.extract_strided_slice %52 {offsets = [0, 0], sizes = [2, 64], strides = [1, 1]} : vector<2x128xf32> to vector<2x64xf32>
    %c0_16 = arith.constant 0 : index
    %c0_17 = arith.constant 0 : index
    %54 = vector.load %arg7[%c0_16, %c0_17] : memref<2x128xf32, #tpu.memory_space<vmem>>, vector<2x64xf32>
    tpu.vector_store %arg7[%c0_16, %c0_17], %53 {strides = array<i32>} : memref<2x128xf32, #tpu.memory_space<vmem>>, vector<2x64xf32>,
    %c0_18 = arith.constant 0 : index
    %c0_19 = arith.constant 0 : index
    %c0_20 = arith.constant 0 : index
    %55 = vector.load %arg5[%c0_18, %c0_19, %c0_20] : memref<1x128x384xf32, #tpu.memory_space<vmem>>, vector<1x128x384xf32>
    %56 = vector.shape_cast %55 : vector<1x128x384xf32> to vector<128x384xf32>
    %cst_21 = arith.constant dense<0.000000e+00> : vector<2x384xf32>
    %57 = tpu.matmul %52, %56, %cst_21 {dimension_numbers = #tpu.dot_dimension_numbers<[1], [0], [0], [1], [0, 0, 1, 1], [], []>} : vector<2x128xf32>, vector<128x384xf32>, vector<2x384xf32> -> vector<2x384xf32>
    %c0_22 = arith.constant 0 : index
    %c0_23 = arith.constant 0 : index
    %c0_24 = arith.constant 0 : index
    %58 = vector.load %arg6[%c0_22, %c0_23, %c0_24] : memref<1x1x384xf32, #tpu.memory_space<vmem>>, vector<1x1x384xf32>
    %59 = vector.shape_cast %58 : vector<1x1x384xf32> to vector<1x384xf32>
    %60 = vector.broadcast %59 : vector<1x384xf32> to vector<2x384xf32>
    %61 = arith.addf %57, %60 : vector<2x384xf32>
    %62 = vector.extract_strided_slice %26 {offsets = [0, 768], sizes = [2, 384], strides = [1, 1]} : vector<2x1152xf32> to vector<2x384xf32>
    %63 = vector.extract_strided_slice %61 {offsets = [0, 0], sizes = [2, 128], strides = [1, 1]} : vector<2x384xf32> to vector<2x128xf32>
    %64 = vector.extract_strided_slice %62 {offsets = [0, 0], sizes = [2, 128], strides = [1, 1]} : vector<2x384xf32> to vector<2x128xf32>
    %65 = arith.addf %63, %64 : vector<2x128xf32>
    %66 = arith.negf %65 : vector<2x128xf32>
    %67 = math.exp %66 : vector<2x128xf32>
    %cst_25 = arith.constant 1.000000e+00 : f32
    %68 = vector.broadcast %cst_25 : f32 to vector<2x128xf32>
    %69 = arith.addf %68, %67 : vector<2x128xf32>
    %70 = arith.divf %68, %69 : vector<2x128xf32>
    %71 = vector.extract_strided_slice %61 {offsets = [0, 128], sizes = [2, 128], strides = [1, 1]} : vector<2x384xf32> to vector<2x128xf32>
    %72 = vector.extract_strided_slice %62 {offsets = [0, 128], sizes = [2, 128], strides = [1, 1]} : vector<2x384xf32> to vector<2x128xf32>
    %73 = arith.addf %71, %72 : vector<2x128xf32>
    %74 = arith.negf %73 : vector<2x128xf32>
    %75 = math.exp %74 : vector<2x128xf32>
    %cst_26 = arith.constant 1.000000e+00 : f32
    %76 = vector.broadcast %cst_26 : f32 to vector<2x128xf32>
    %77 = arith.addf %76, %75 : vector<2x128xf32>
    %78 = arith.divf %76, %77 : vector<2x128xf32>
    %79 = vector.extract_strided_slice %61 {offsets = [0, 256], sizes = [2, 128], strides = [1, 1]} : vector<2x384xf32> to vector<2x128xf32>
    %80 = vector.extract_strided_slice %62 {offsets = [0, 256], sizes = [2, 128], strides = [1, 1]} : vector<2x384xf32> to vector<2x128xf32>
    %81 = arith.mulf %70, %80 : vector<2x128xf32>
    %82 = arith.addf %79, %81 : vector<2x128xf32>
    %83 = math.tanh %82 : vector<2x128xf32>
    %84 = arith.subf %19, %83 : vector<2x128xf32>
    %85 = arith.mulf %78, %84 : vector<2x128xf32>
    %86 = arith.addf %83, %85 : vector<2x128xf32>
    %87 = vector.extract_strided_slice %86 {offsets = [0, 0], sizes = [2, 64], strides = [1, 1]} : vector<2x128xf32> to vector<2x64xf32>
    %c0_27 = arith.constant 0 : index
    %c64 = arith.constant 64 : index
    %88 = vector.load %arg7[%c0_27, %c64] : memref<2x128xf32, #tpu.memory_space<vmem>>, vector<2x64xf32>
    tpu.vector_store %arg7[%c0_27, %c64], %87 {strides = array<i32>} : memref<2x128xf32, #tpu.memory_space<vmem>>, vector<2x64xf32>,
    return
  }
}

</mosaic_0001>

<llo_original>
// kernel: tpu_custom_call.1
$region0: #{tpu_custom_call.1}
  #allocation0 [shape = 'u32[]', space=smem, size = 0x4, offset = 0x4, fixed_abs, tag = 'smem constant byte address 0x4 - core index']
  #allocation1 [shape = 'u32[144,128]{1,0:T(1,128)}', space=vmem, size = 0x12000, scoped, tag = 'internal scratch']
  %s0 = inlined_call_operand.hbm [shape: f32[8,2,16], index: 0, kind: input, shape index: {}]
  %s1 = inlined_call_operand.vmem [shape: f32[1,16], index: 1, kind: input, shape index: {}]
  %s2 = inlined_call_operand.vmem [shape: f32[2,128], index: 2, kind: input, shape index: {}]
  %s3 = inlined_call_operand.hbm [shape: f32[48,1152], index: 3, kind: input, shape index: {}]
  %s4 = inlined_call_operand.vmem [shape: f32[1,1152], index: 4, kind: input, shape index: {}]
  %s5 = inlined_call_operand.hbm [shape: f32[1,128,384], index: 5, kind: input, shape index: {}]
  %s6 = inlined_call_operand.vmem [shape: f32[1,1,384], index: 6, kind: input, shape index: {}]
  %s7 = inlined_call_operand.hbm [shape: f32[2,128], index: 7, kind: output, shape index: {}]
  %s8 = sld [smem:[#allocation0]]
  $region50: #{tpu_custom_call.1} parent=0
    _
  %s10 = ssub.s32 1, %s8
  %s11 = scalar_select 0, %s10, %s8
  $region1: #{tpu_custom_call.1} parent=0
    #allocation2 [shape = 'u8[8192]{0}', space=vmem, size = 0x2000, scoped, tag = 'input window, operand 0, single buffered']
    #allocation3 [shape = 's32[1]{0}', space=sflag, size = 0x4, scoped, tag = 'scoped memory for tpu_custom_call.1']
    #allocation4 [shape = 's32[1]{0}', space=sflag, size = 0x4, scoped, tag = 'scoped memory for tpu_custom_call.1']
    #allocation5 [shape = 'u8[221184]{0}', space=vmem, size = 0x36000, scoped, tag = 'input window, operand 3, single buffered']
    #allocation6 [shape = 's32[1]{0}', space=sflag, size = 0x4, scoped, tag = 'scoped memory for tpu_custom_call.1']
    #allocation7 [shape = 'u8[196608]{0}', space=vmem, size = 0x30000, scoped, tag = 'input window, operand 5, single buffered']
    #allocation8 [shape = 'u8[1024]{0}', space=vmem, size = 0x400, scoped, tag = 'output window, operand 0, single buffered']
    %12 = vsyncpa [#allocation3], 0
    %13 = vsyncpa [#allocation6], 0
    %14 = vsyncpa [#allocation4], 0
    // Predicated region
    $region2: #{tpu_custom_call.1} parent=1 // pred_check
      _
    $region3: #{tpu_custom_call.1} parent=1 // pred_check_branch
      %16 = sbr.rel (0) target = $region5
    $region4: #{tpu_custom_call.1} parent=1 // pred_region
      %s18 = ssub.s32 256, 256
      %19 = vsyncadd [#allocation3], %s18
      %s20 = sshll.u32 [#allocation2], 4
      %s21 = int_to_ptr.vmem [resolvable:$true] %s20
      %26 = dma.hbm_to_vmem [thread:$0]  %s0, 256, %s21, [#allocation3], 32, 32, 2
    $region5: #{tpu_custom_call.1} parent=1 // pred_fallthru
      _
    // Predicated region
    $region6: #{tpu_custom_call.1} parent=1 // pred_check
      _
    $region7: #{tpu_custom_call.1} parent=1 // pred_check_branch
      %28 = sbr.rel (0) target = $region9
    $region8: #{tpu_custom_call.1} parent=1 // pred_region
      _
    $region9: #{tpu_custom_call.1} parent=1 // pred_fallthru
      _
    // Predicated region
    $region10: #{tpu_custom_call.1} parent=1 // pred_check
      _
    $region11: #{tpu_custom_call.1} parent=1 // pred_check_branch
      %30 = sbr.rel (0) target = $region13
    $region12: #{tpu_custom_call.1} parent=1 // pred_region
      _
    $region13: #{tpu_custom_call.1} parent=1 // pred_fallthru
      _
    // Predicated region
    $region14: #{tpu_custom_call.1} parent=1 // pred_check
      _
    $region15: #{tpu_custom_call.1} parent=1 // pred_check_branch
      %32 = sbr.rel (0) target = $region17
    $region16: #{tpu_custom_call.1} parent=1 // pred_region
      %s34 = ssub.s32 6912, 6912
      %35 = vsyncadd [#allocation6], %s34
      %s36 = sshll.u32 [#allocation5], 4
      %s37 = int_to_ptr.vmem [resolvable:$true] %s36
      %42 = dma.hbm_to_vmem [thread:$0]  %s3, 6912, %s37, [#allocation6], 1152, 1152, 72
    $region17: #{tpu_custom_call.1} parent=1 // pred_fallthru
      _
    // Predicated region
    $region18: #{tpu_custom_call.1} parent=1 // pred_check
      _
    $region19: #{tpu_custom_call.1} parent=1 // pred_check_branch
      %44 = sbr.rel (0) target = $region21
    $region20: #{tpu_custom_call.1} parent=1 // pred_region
      _
    $region21: #{tpu_custom_call.1} parent=1 // pred_fallthru
      _
    // Predicated region
    $region22: #{tpu_custom_call.1} parent=1 // pred_check
      _
    $region23: #{tpu_custom_call.1} parent=1 // pred_check_branch
      %46 = sbr.rel (0) target = $region25
    $region24: #{tpu_custom_call.1} parent=1 // pred_region
      %s48 = ssub.s32 6144, 6144
      %49 = vsyncadd [#allocation6], %s48
      %s50 = sshll.u32 [#allocation7], 4
      %s51 = int_to_ptr.vmem [resolvable:$true] %s50
      %56 = dma.hbm_to_vmem [thread:$0]  %s5, 6144, %s51, [#allocation6], 384, 384, 24
    $region25: #{tpu_custom_call.1} parent=1 // pred_fallthru
      _
    // Predicated region
    $region26: #{tpu_custom_call.1} parent=1 // pred_check
      _
    $region27: #{tpu_custom_call.1} parent=1 // pred_check_branch
      %58 = sbr.rel (0) target = $region29
    $region28: #{tpu_custom_call.1} parent=1 // pred_region
      _
    $region29: #{tpu_custom_call.1} parent=1 // pred_fallthru
      _
    // Predicated region
    $region30: #{tpu_custom_call.1} parent=1 // pred_check
      _
    $region31: #{tpu_custom_call.1} parent=1 // pred_check_branch
      %60 = sbr.rel (0) target = $region33
    $region32: #{tpu_custom_call.1} parent=1 // pred_region
      %61 = dma.done [#allocation3], 256
    $region33: #{tpu_custom_call.1} parent=1 // pred_fallthru
      _
    // Predicated region
    $region34: #{tpu_custom_call.1} parent=1 // pred_check
      _
    $region35: #{tpu_custom_call.1} parent=1 // pred_check_branch
      %63 = sbr.rel (0) target = $region37
    $region36: #{tpu_custom_call.1} parent=1 // pred_region
      %64 = dma.done [#allocation6], 6912
    $region37: #{tpu_custom_call.1} parent=1 // pred_fallthru
      _
    // Predicated region
    $region38: #{tpu_custom_call.1} parent=1 // pred_check
      _
    $region39: #{tpu_custom_call.1} parent=1 // pred_check_branch
      %66 = sbr.rel (0) target = $region41
    $region40: #{tpu_custom_call.1} parent=1 // pred_region
      %67 = dma.done [#allocation6], 6144
    $region41: #{tpu_custom_call.1} parent=1 // pred_fallthru
      _
    %v68 = vld [vmem:[#allocation2] sm:$0x3]
    %v69 = vld [vmem:[#allocation2 + $0x2] sm:$0x3]
    %v70 = vld [vmem:[#allocation2 + $0x4] sm:$0x3]
    %v71 = vld [vmem:[#allocation2 + $0x6] sm:$0x3]
    %v72 = vld [vmem:[#allocation2 + $0x8] sm:$0x3]
    %v73 = vld [vmem:[#allocation2 + $0xa] sm:$0x3]
    %v74 = vld [vmem:[#allocation2 + $0xc] sm:$0x3]
    %v75 = vld [vmem:[#allocation2 + $0xe] sm:$0x3]
    %v76 = vld [vmem:[%s1] sm:$0x1]
    %v78 = vlaneseq
    %v79 = vshrl.u32 %v78, 7
    %v80 = vsub.s32 0, %v79
    %v81 = vrot.slane %v76, %v80
    %v83 = vmul.f32 %v68, %v81
    %v84 = vmul.f32 %v69, %v81
    %v85 = vmul.f32 %v70, %v81
    %v86 = vmul.f32 %v71, %v81
    %v87 = vmul.f32 %v72, %v81
    %v88 = vmul.f32 %v73, %v81
    %v89 = vmul.f32 %v74, %v81
    %v90 = vmul.f32 %v75, %v81
    %vm91 = vcmask 123904
    %v92 = vsel %vm91, %v83, 0.0
    %93 = vadd.xlane.f32.xlu0 %v92
    %v94 = vpop.xlane.xlu0 %93
    %v95 = vsel %vm91, %v84, 0.0
    %96 = vadd.xlane.f32.xlu0 %v95
    %v97 = vpop.xlane.xlu0 %96
    %v98 = vsel %vm91, %v85, 0.0
    %99 = vadd.xlane.f32.xlu0 %v98
    %v100 = vpop.xlane.xlu0 %99
    %v101 = vsel %vm91, %v86, 0.0
    %102 = vadd.xlane.f32.xlu0 %v101
    %v103 = vpop.xlane.xlu0 %102
    %v104 = vsel %vm91, %v87, 0.0
    %105 = vadd.xlane.f32.xlu0 %v104
    %v106 = vpop.xlane.xlu0 %105
    %v107 = vsel %vm91, %v88, 0.0
    %108 = vadd.xlane.f32.xlu0 %v107
    %v109 = vpop.xlane.xlu0 %108
    %v110 = vsel %vm91, %v89, 0.0
    %111 = vadd.xlane.f32.xlu0 %v110
    %v112 = vpop.xlane.xlu0 %111
    %v113 = vsel %vm91, %v90, 0.0
    %114 = vadd.xlane.f32.xlu0 %v113
    %v115 = vpop.xlane.xlu0 %114
    %vm116 = vcmask 1041408
    %v117 = vsel %vm116, %v94, -inf
    %v118 = vsel %vm116, %v97, -inf
    %v119 = vsel %vm116, %v100, -inf
    %v120 = vsel %vm116, %v103, -inf
    %v121 = vsel %vm116, %v106, -inf
    %v122 = vmax.f32 %v117, %v121
    %v123 = vsel %vm116, %v109, -inf
    %v124 = vmax.f32 %v118, %v123
    %v125 = vsel %vm116, %v112, -inf
    %v126 = vmax.f32 %v119, %v125
    %v127 = vsel %vm116, %v115, -inf
    %v128 = vmax.f32 %v120, %v127
    %v129 = vmax.f32 %v122, %v124
    %v130 = vmax.f32 %v126, %v128
    %v131 = vmax.f32 %v129, %v130
    %v132 = vsub.f32 %v94, %v131
    %v133 = vsub.f32 %v97, %v131
    %v134 = vsub.f32 %v100, %v131
    %v135 = vsub.f32 %v103, %v131
    %v136 = vsub.f32 %v106, %v131
    %v137 = vsub.f32 %v109, %v131
    %v138 = vsub.f32 %v112, %v131
    %v139 = vsub.f32 %v115, %v131
    %v140 = vmul.f32 %v132, 1.442695
    %v141 = vpow.pop %v140
    %v142 = vmul.f32 %v133, 1.442695
    %v143 = vpow.pop %v142
    %v144 = vmul.f32 %v134, 1.442695
    %v145 = vpow.pop %v144
    %v146 = vmul.f32 %v135, 1.442695
    %v147 = vpow.pop %v146
    %v148 = vmul.f32 %v136, 1.442695
    %v149 = vpow.pop %v148
    %v150 = vmul.f32 %v137, 1.442695
    %v151 = vpow.pop %v150
    %v152 = vmul.f32 %v138, 1.442695
    %v153 = vpow.pop %v152
    %v154 = vmul.f32 %v139, 1.442695
    %v155 = vpow.pop %v154
    %v156 = vsel %vm116, %v141, 0.0
    %v157 = vsel %vm116, %v143, 0.0
    %v158 = vadd.f32 %v156, %v157
    %v159 = vsel %vm116, %v145, 0.0
    %v160 = vadd.f32 %v158, %v159
    %v161 = vsel %vm116, %v147, 0.0
    %v162 = vadd.f32 %v160, %v161
    %v163 = vsel %vm116, %v149, 0.0
    %v164 = vadd.f32 %v162, %v163
    %v165 = vsel %vm116, %v151, 0.0
    %v166 = vadd.f32 %v164, %v165
    %v167 = vsel %vm116, %v153, 0.0
    %v168 = vadd.f32 %v166, %v167
    %v169 = vsel %vm116, %v155, 0.0
    %v170 = vadd.f32 %v168, %v169
    %v171 = vrcp.pop %v170
    %v172 = vmul.f32 %v141, %v171
    %v173 = vmul.f32 %v143, %v171
    %v174 = vmul.f32 %v145, %v171
    %v175 = vmul.f32 %v147, %v171
    %v176 = vmul.f32 %v149, %v171
    %v177 = vmul.f32 %v151, %v171
    %v178 = vmul.f32 %v153, %v171
    %v179 = vmul.f32 %v155, %v171
    %v180 = vmul.f32 %v172, %v68
    %v181 = vmul.f32 %v173, %v69
    %v182 = vmul.f32 %v174, %v70
    %v183 = vmul.f32 %v175, %v71
    %v184 = vmul.f32 %v176, %v72
    %v185 = vmul.f32 %v177, %v73
    %v186 = vmul.f32 %v178, %v74
    %v187 = vmul.f32 %v179, %v75
    %v188 = vsel %vm91, %v180, 0.0
    %v189 = vsel %vm91, %v181, 0.0
    %v190 = vadd.f32 %v188, %v189
    %v191 = vsel %vm91, %v182, 0.0
    %v192 = vadd.f32 %v190, %v191
    %v193 = vsel %vm91, %v183, 0.0
    %v194 = vadd.f32 %v192, %v193
    %v195 = vsel %vm91, %v184, 0.0
    %v196 = vadd.f32 %v194, %v195
    %v197 = vsel %vm91, %v185, 0.0
    %v198 = vadd.f32 %v196, %v197
    %v199 = vsel %vm91, %v186, 0.0
    %v200 = vadd.f32 %v198, %v199
    %v201 = vsel %vm91, %v187, 0.0
    %v202 = vadd.f32 %v200, %v201
    %v203 = vld [vmem:[%s2] sm:$0x3]
    %205 = vrot.lane.b32.xlu0 %v203, 16
    %v206 = vpop.permute.xlu0 %205
    %vm208 = vcmask 130048
    %v209 = vsel %vm208, %v202, %v206
    %v210 = vld [vmem:[#allocation5] sm:$0xff]
    %v211 = vld [vmem:[#allocation5 + $0x8] sm:$0xff]
    %v212 = vld [vmem:[#allocation5 + $0x10] sm:$0xff]
    %v213 = vld [vmem:[#allocation5 + $0x18] sm:$0xff]
    %v214 = vld [vmem:[#allocation5 + $0x20] sm:$0xff]
    %v215 = vld [vmem:[#allocation5 + $0x28] sm:$0xff]
    %v216 = vld [vmem:[#allocation5 + $0x30] sm:$0xff]
    %v217 = vld [vmem:[#allocation5 + $0x38] sm:$0xff]
    %v218 = vld [vmem:[#allocation5 + $0x40] sm:$0xff]
    %v219 = vld [vmem:[#allocation5 + $0x48] sm:$0xff]
    %v220 = vld [vmem:[#allocation5 + $0x50] sm:$0xff]
    %v221 = vld [vmem:[#allocation5 + $0x58] sm:$0xff]
    %v222 = vld [vmem:[#allocation5 + $0x60] sm:$0xff]
    %v223 = vld [vmem:[#allocation5 + $0x68] sm:$0xff]
    %v224 = vld [vmem:[#allocation5 + $0x70] sm:$0xff]
    %v225 = vld [vmem:[#allocation5 + $0x78] sm:$0xff]
    %v226 = vld [vmem:[#allocation5 + $0x80] sm:$0xff]
    %v227 = vld [vmem:[#allocation5 + $0x88] sm:$0xff]
    %v228 = vld [vmem:[#allocation5 + $0x90] sm:$0xff]
    %v229 = vld [vmem:[#allocation5 + $0x98] sm:$0xff]
    %v230 = vld [vmem:[#allocation5 + $0xa0] sm:$0xff]
    %v231 = vld [vmem:[#allocation5 + $0xa8] sm:$0xff]
    %v232 = vld [vmem:[#allocation5 + $0xb0] sm:$0xff]
    %v233 = vld [vmem:[#allocation5 + $0xb8] sm:$0xff]
    %v234 = vld [vmem:[#allocation5 + $0xc0] sm:$0xff]
    %v235 = vld [vmem:[#allocation5 + $0xc8] sm:$0xff]
    %v236 = vld [vmem:[#allocation5 + $0xd0] sm:$0xff]
    %v237 = vld [vmem:[#allocation5 + $0xd8] sm:$0xff]
    %v238 = vld [vmem:[#allocation5 + $0xe0] sm:$0xff]
    %v239 = vld [vmem:[#allocation5 + $0xe8] sm:$0xff]
    %v240 = vld [vmem:[#allocation5 + $0xf0] sm:$0xff]
    %v241 = vld [vmem:[#allocation5 + $0xf8] sm:$0xff]
    %v242 = vld [vmem:[#allocation5 + $0x100] sm:$0xff]
    %v243 = vld [vmem:[#allocation5 + $0x108] sm:$0xff]
    %v244 = vld [vmem:[#allocation5 + $0x110] sm:$0xff]
    %v245 = vld [vmem:[#allocation5 + $0x118] sm:$0xff]
    %v246 = vld [vmem:[#allocation5 + $0x120] sm:$0xff]
    %v247 = vld [vmem:[#allocation5 + $0x128] sm:$0xff]
    %v248 = vld [vmem:[#allocation5 + $0x130] sm:$0xff]
    %v249 = vld [vmem:[#allocation5 + $0x138] sm:$0xff]
    %v250 = vld [vmem:[#allocation5 + $0x140] sm:$0xff]
    %v251 = vld [vmem:[#allocation5 + $0x148] sm:$0xff]
    %v252 = vld [vmem:[#allocation5 + $0x150] sm:$0xff]
    %v253 = vld [vmem:[#allocation5 + $0x158] sm:$0xff]
    %v254 = vld [vmem:[#allocation5 + $0x160] sm:$0xff]
    %v255 = vld [vmem:[#allocation5 + $0x168] sm:$0xff]
    %v256 = vld [vmem:[#allocation5 + $0x170] sm:$0xff]
    %v257 = vld [vmem:[#allocation5 + $0x178] sm:$0xff]
    %v258 = vld [vmem:[#allocation5 + $0x180] sm:$0xff]
    %v259 = vld [vmem:[#allocation5 + $0x188] sm:$0xff]
    %v260 = vld [vmem:[#allocation5 + $0x190] sm:$0xff]
    %v261 = vld [vmem:[#allocation5 + $0x198] sm:$0xff]
    %v262 = vld [vmem:[#allocation5 + $0x1a0] sm:$0xff]
    %v263 = vld [vmem:[#allocation5 + $0x1a8] sm:$0xff]
    %v264 = vld [vmem:[%s4] sm:$0xff]
    %v265 = vld [vmem:[%s4 + $0x8] sm:$0x1]
    %v268 = vlaneseq
    %v269 = vshrl.u32 %v268, 7
    %v270 = vsub.s32 0, %v269
    %v271 = vrot.slane %v264, %v270
    %v272 = vlaneseq
    %v273 = vshrl.u32 %v272, 7
    %v274 = vsub.s32 1, %v273
    %v275 = vrot.slane %v264, %v274
    %v276 = vlaneseq
    %v277 = vshrl.u32 %v276, 7
    %v278 = vsub.s32 2, %v277
    %v279 = vrot.slane %v264, %v278
    %v280 = vlaneseq
    %v281 = vshrl.u32 %v280, 7
    %v282 = vsub.s32 3, %v281
    %v283 = vrot.slane %v264, %v282
    %v284 = vlaneseq
    %v285 = vshrl.u32 %v284, 7
    %v286 = vsub.s32 4, %v285
    %v287 = vrot.slane %v264, %v286
    %v288 = vlaneseq
    %v289 = vshrl.u32 %v288, 7
    %v290 = vsub.s32 5, %v289
    %v291 = vrot.slane %v264, %v290
    %v292 = vlaneseq
    %v293 = vshrl.u32 %v292, 7
    %v294 = vsub.s32 6, %v293
    %v295 = vrot.slane %v264, %v294
    %v296 = vlaneseq
    %v297 = vshrl.u32 %v296, 7
    %v298 = vsub.s32 7, %v297
    %v299 = vrot.slane %v264, %v298
    %v300 = vlaneseq
    %v301 = vshrl.u32 %v300, 7
    %v302 = vsub.s32 0, %v301
    %v303 = vrot.slane %v265, %v302
    %vm313 = vcmask 392192
    %v315 = vsel %vm313, %v209, 0
    %317 = vmatprep.subr.mxu0 %v211
    %318 = vmatpush1.msra.mxu0 %v210
    %319 = vmatprep.subr.mxu0 %v220
    %320 = vmatpush1.msra.mxu0 %v219
    %321 = vmatprep.subr.mxu0 %v229
    %322 = vmatpush1.msra.mxu0 %v228
    %323 = vmatprep.subr.mxu0 %v238
    %324 = vmatpush1.msra.mxu0 %v237
    %325 = vmatprep.subr.mxu0 %v247
    %326 = vmatpush1.msra.mxu0 %v246
    %327 = vmatprep.subr.mxu0 %v256
    %328 = vmatpush1.msra.mxu0 %v255
    %329 = vmatprep.subr.mxu0 0.0
    %330 = vmatpush1.msra.mxu0 0.0
    %331 = vmatprep.subr.mxu0 0.0
    %332 = vmatpush1.msra.mxu0 0.0
    %333 = vmatprep.subr.mxu0 0.0
    %334 = vmatpush1.msra.mxu0 0.0
    %335 = vmatprep.subr.mxu0 0.0
    %336 = vmatpush1.msra.mxu0 0.0
    %337 = vmatprep.subr.mxu0 0.0
    %338 = vmatpush1.msra.mxu0 0.0
    %339 = vmatprep.subr.mxu0 0.0
    %340 = vmatpush1.msra.mxu0 0.0
    %341 = vmatprep.subr.mxu0 0.0
    %342 = vmatpush1.msra.mxu0 0.0
    %343 = vmatprep.subr.mxu0 0.0
    %344 = vmatpush1.msra.mxu0 0.0
    %345 = vmatprep.subr.mxu0 0.0
    %346 = vmatpush1.msra.mxu0 0.0
    %347 = vmatprep.subr.mxu0 0.0
    %348 = vmatpush1.msra.mxu0 0.0
    %349 = vmatprep.subr.mxu0 0.0
    %350 = vmatpush1.msra.mxu0 0.0
    %351 = vmatprep.subr.mxu0 0.0
    %352 = vmatpush1.msra.mxu0 0.0
    %353 = vmatprep.subr.mxu0 0.0
    %354 = vmatpush1.msra.mxu0 0.0
    %355 = vmatprep.subr.mxu0 0.0
    %356 = vmatpush1.msra.mxu0 0.0
    %357 = vmatprep.subr.mxu0 0.0
    %358 = vmatpush1.msra.mxu0 0.0
    %359 = vmatprep.subr.mxu0 0.0
    %360 = vmatpush1.msra.mxu0 0.0
    %361 = vmatprep.subr.mxu0 0.0
    %362 = vmatpush1.msra.mxu0 0.0
    %363 = vmatprep.subr.mxu0 0.0
    %364 = vmatpush1.msra.mxu0 0.0
    %365 = vmatprep.subr.mxu0 0.0
    %366 = vmatpush1.msra.mxu0 0.0
    %367 = vmatprep.subr.mxu0 0.0
    %368 = vmatpush1.msra.mxu0 0.0
    %369 = vmatprep.subr.mxu0 0.0
    %370 = vmatpush1.msra.mxu0 0.0
    %371 = vmatprep.subr.mxu0 0.0
    %372 = vmatpush1.msra.mxu0 0.0
    %373 = vmatprep.subr.mxu0 0.0
    %374 = vmatpush1.msra.mxu0 0.0
    %375 = vmatprep.subr.mxu0 0.0
    %376 = vmatpush1.msra.mxu0 0.0
    %377 = vmatprep.subr.mxu0 0.0
    %378 = vmatpush1.msra.mxu0 0.0
    %379 = vmatprep.subr.mxu0 0.0
    %380 = vmatpush1.msra.mxu0 0.0
    %381 = vmatprep.mubr.f32.mxu0 0.0
    %382 = vmatmul.mubr.f32.gmra.mrb[0].mxu0 %v315
    %v383 = vpop.f32.mrb[0].mxu0
    %v384 = vadd.f32 %v271, %v383
    %v385 = vpop.f32.mrb[0].mxu0
    %v386 = vadd.f32 %v275, %v385
    %387 = vdwg.mxu0
    %388 = vmatprep.subr.mxu0 %v213
    %389 = vmatpush1.msra.mxu0 %v212
    %390 = vmatprep.subr.mxu0 %v222
    %391 = vmatpush1.msra.mxu0 %v221
    %392 = vmatprep.subr.mxu0 %v231
    %393 = vmatpush1.msra.mxu0 %v230
    %394 = vmatprep.subr.mxu0 %v240
    %395 = vmatpush1.msra.mxu0 %v239
    %396 = vmatprep.subr.mxu0 %v249
    %397 = vmatpush1.msra.mxu0 %v248
    %398 = vmatprep.subr.mxu0 %v258
    %399 = vmatpush1.msra.mxu0 %v257
    %400 = vmatprep.subr.mxu0 0.0
    %401 = vmatpush1.msra.mxu0 0.0
    %402 = vmatprep.subr.mxu0 0.0
    %403 = vmatpush1.msra.mxu0 0.0
    %404 = vmatprep.subr.mxu0 0.0
    %405 = vmatpush1.msra.mxu0 0.0
    %406 = vmatprep.subr.mxu0 0.0
    %407 = vmatpush1.msra.mxu0 0.0
    %408 = vmatprep.subr.mxu0 0.0
    %409 = vmatpush1.msra.mxu0 0.0
    %410 = vmatprep.subr.mxu0 0.0
    %411 = vmatpush1.msra.mxu0 0.0
    %412 = vmatprep.subr.mxu0 0.0
    %413 = vmatpush1.msra.mxu0 0.0
    %414 = vmatprep.subr.mxu0 0.0
    %415 = vmatpush1.msra.mxu0 0.0
    %416 = vmatprep.subr.mxu0 0.0
    %417 = vmatpush1.msra.mxu0 0.0
    %418 = vmatprep.subr.mxu0 0.0
    %419 = vmatpush1.msra.mxu0 0.0
    %420 = vmatprep.subr.mxu0 0.0
    %421 = vmatpush1.msra.mxu0 0.0
    %422 = vmatprep.subr.mxu0 0.0
    %423 = vmatpush1.msra.mxu0 0.0
    %424 = vmatprep.subr.mxu0 0.0
    %425 = vmatpush1.msra.mxu0 0.0
    %426 = vmatprep.subr.mxu0 0.0
    %427 = vmatpush1.msra.mxu0 0.0
    %428 = vmatprep.subr.mxu0 0.0
    %429 = vmatpush1.msra.mxu0 0.0
    %430 = vmatprep.subr.mxu0 0.0
    %431 = vmatpush1.msra.mxu0 0.0
    %432 = vmatprep.subr.mxu0 0.0
    %433 = vmatpush1.msra.mxu0 0.0
    %434 = vmatprep.subr.mxu0 0.0
    %435 = vmatpush1.msra.mxu0 0.0
    %436 = vmatprep.subr.mxu0 0.0
    %437 = vmatpush1.msra.mxu0 0.0
    %438 = vmatprep.subr.mxu0 0.0
    %439 = vmatpush1.msra.mxu0 0.0
    %440 = vmatprep.subr.mxu0 0.0
    %441 = vmatpush1.msra.mxu0 0.0
    %442 = vmatprep.subr.mxu0 0.0
    %443 = vmatpush1.msra.mxu0 0.0
    %444 = vmatprep.subr.mxu0 0.0
    %445 = vmatpush1.msra.mxu0 0.0
    %446 = vmatprep.subr.mxu0 0.0
    %447 = vmatpush1.msra.mxu0 0.0
    %448 = vmatprep.subr.mxu0 0.0
    %449 = vmatpush1.msra.mxu0 0.0
    %450 = vmatprep.subr.mxu0 0.0
    %451 = vmatpush1.msra.mxu0 0.0
    %452 = vmatprep.mubr.f32.mxu0 0.0
    %453 = vmatmul.mubr.f32.gmra.mrb[0].mxu0 %v315
    %v454 = vpop.f32.mrb[0].mxu0
    %v455 = vadd.f32 %v279, %v454
    %v456 = vpop.f32.mrb[0].mxu0
    %v457 = vadd.f32 %v283, %v456
    %458 = vdwg.mxu0
    %459 = vmatprep.subr.mxu0 %v215
    %460 = vmatpush1.msra.mxu0 %v214
    %461 = vmatprep.subr.mxu0 %v224
    %462 = vmatpush1.msra.mxu0 %v223
    %463 = vmatprep.subr.mxu0 %v233
    %464 = vmatpush1.msra.mxu0 %v232
    %465 = vmatprep.subr.mxu0 %v242
    %466 = vmatpush1.msra.mxu0 %v241
    %467 = vmatprep.subr.mxu0 %v251
    %468 = vmatpush1.msra.mxu0 %v250
    %469 = vmatprep.subr.mxu0 %v260
    %470 = vmatpush1.msra.mxu0 %v259
    %471 = vmatprep.subr.mxu0 0.0
    %472 = vmatpush1.msra.mxu0 0.0
    %473 = vmatprep.subr.mxu0 0.0
    %474 = vmatpush1.msra.mxu0 0.0
    %475 = vmatprep.subr.mxu0 0.0
    %476 = vmatpush1.msra.mxu0 0.0
    %477 = vmatprep.subr.mxu0 0.0
    %478 = vmatpush1.msra.mxu0 0.0
    %479 = vmatprep.subr.mxu0 0.0
    %480 = vmatpush1.msra.mxu0 0.0
    %481 = vmatprep.subr.mxu0 0.0
    %482 = vmatpush1.msra.mxu0 0.0
    %483 = vmatprep.subr.mxu0 0.0
    %484 = vmatpush1.msra.mxu0 0.0
    %485 = vmatprep.subr.mxu0 0.0
    %486 = vmatpush1.msra.mxu0 0.0
    %487 = vmatprep.subr.mxu0 0.0
    %488 = vmatpush1.msra.mxu0 0.0
    %489 = vmatprep.subr.mxu0 0.0
    %490 = vmatpush1.msra.mxu0 0.0
    %491 = vmatprep.subr.mxu0 0.0
    %492 = vmatpush1.msra.mxu0 0.0
    %493 = vmatprep.subr.mxu0 0.0
    %494 = vmatpush1.msra.mxu0 0.0
    %495 = vmatprep.subr.mxu0 0.0
    %496 = vmatpush1.msra.mxu0 0.0
    %497 = vmatprep.subr.mxu0 0.0
    %498 = vmatpush1.msra.mxu0 0.0
    %499 = vmatprep.subr.mxu0 0.0
    %500 = vmatpush1.msra.mxu0 0.0
    %501 = vmatprep.subr.mxu0 0.0
    %502 = vmatpush1.msra.mxu0 0.0
    %503 = vmatprep.subr.mxu0 0.0
    %504 = vmatpush1.msra.mxu0 0.0
    %505 = vmatprep.subr.mxu0 0.0
    %506 = vmatpush1.msra.mxu0 0.0
    %507 = vmatprep.subr.mxu0 0.0
    %508 = vmatpush1.msra.mxu0 0.0
    %509 = vmatprep.subr.mxu0 0.0
    %510 = vmatpush1.msra.mxu0 0.0
    %511 = vmatprep.subr.mxu0 0.0
    %512 = vmatpush1.msra.mxu0 0.0
    %513 = vmatprep.subr.mxu0 0.0
    %514 = vmatpush1.msra.mxu0 0.0
    %515 = vmatprep.subr.mxu0 0.0
    %516 = vmatpush1.msra.mxu0 0.0
    %517 = vmatprep.subr.mxu0 0.0
    %518 = vmatpush1.msra.mxu0 0.0
    %519 = vmatprep.subr.mxu0 0.0
    %520 = vmatpush1.msra.mxu0 0.0
    %521 = vmatprep.subr.mxu0 0.0
    %522 = vmatpush1.msra.mxu0 0.0
    %523 = vmatprep.mubr.f32.mxu0 0.0
    %524 = vmatmul.mubr.f32.gmra.mrb[0].mxu0 %v315
    %v525 = vpop.f32.mrb[0].mxu0
    %v526 = vadd.f32 %v287, %v525
    %v527 = vpop.f32.mrb[0].mxu0
    %v528 = vadd.f32 %v291, %v527
    %529 = vdwg.mxu0
    %530 = vmatprep.subr.mxu0 %v217
    %531 = vmatpush1.msra.mxu0 %v216
    %532 = vmatprep.subr.mxu0 %v226
    %533 = vmatpush1.msra.mxu0 %v225
    %534 = vmatprep.subr.mxu0 %v235
    %535 = vmatpush1.msra.mxu0 %v234
    %536 = vmatprep.subr.mxu0 %v244
    %537 = vmatpush1.msra.mxu0 %v243
    %538 = vmatprep.subr.mxu0 %v253
    %539 = vmatpush1.msra.mxu0 %v252
    %540 = vmatprep.subr.mxu0 %v262
    %541 = vmatpush1.msra.mxu0 %v261
    %542 = vmatprep.subr.mxu0 0.0
    %543 = vmatpush1.msra.mxu0 0.0
    %544 = vmatprep.subr.mxu0 0.0
    %545 = vmatpush1.msra.mxu0 0.0
    %546 = vmatprep.subr.mxu0 0.0
    %547 = vmatpush1.msra.mxu0 0.0
    %548 = vmatprep.subr.mxu0 0.0
    %549 = vmatpush1.msra.mxu0 0.0
    %550 = vmatprep.subr.mxu0 0.0
    %551 = vmatpush1.msra.mxu0 0.0
    %552 = vmatprep.subr.mxu0 0.0
    %553 = vmatpush1.msra.mxu0 0.0
    %554 = vmatprep.subr.mxu0 0.0
    %555 = vmatpush1.msra.mxu0 0.0
    %556 = vmatprep.subr.mxu0 0.0
    %557 = vmatpush1.msra.mxu0 0.0
    %558 = vmatprep.subr.mxu0 0.0
    %559 = vmatpush1.msra.mxu0 0.0
    %560 = vmatprep.subr.mxu0 0.0
    %561 = vmatpush1.msra.mxu0 0.0
    %562 = vmatprep.subr.mxu0 0.0
    %563 = vmatpush1.msra.mxu0 0.0
    %564 = vmatprep.subr.mxu0 0.0
    %565 = vmatpush1.msra.mxu0 0.0
    %566 = vmatprep.subr.mxu0 0.0
    %567 = vmatpush1.msra.mxu0 0.0
    %568 = vmatprep.subr.mxu0 0.0
    %569 = vmatpush1.msra.mxu0 0.0
    %570 = vmatprep.subr.mxu0 0.0
    %571 = vmatpush1.msra.mxu0 0.0
    %572 = vmatprep.subr.mxu0 0.0
    %573 = vmatpush1.msra.mxu0 0.0
    %574 = vmatprep.subr.mxu0 0.0
    %575 = vmatpush1.msra.mxu0 0.0
    %576 = vmatprep.subr.mxu0 0.0
    %577 = vmatpush1.msra.mxu0 0.0
    %578 = vmatprep.subr.mxu0 0.0
    %579 = vmatpush1.msra.mxu0 0.0
    %580 = vmatprep.subr.mxu0 0.0
    %581 = vmatpush1.msra.mxu0 0.0
    %582 = vmatprep.subr.mxu0 0.0
    %583 = vmatpush1.msra.mxu0 0.0
    %584 = vmatprep.subr.mxu0 0.0
    %585 = vmatpush1.msra.mxu0 0.0
    %586 = vmatprep.subr.mxu0 0.0
    %587 = vmatpush1.msra.mxu0 0.0
    %588 = vmatprep.subr.mxu0 0.0
    %589 = vmatpush1.msra.mxu0 0.0
    %590 = vmatprep.subr.mxu0 0.0
    %591 = vmatpush1.msra.mxu0 0.0
    %592 = vmatprep.subr.mxu0 0.0
    %593 = vmatpush1.msra.mxu0 0.0
    %594 = vmatprep.mubr.f32.mxu0 0.0
    %595 = vmatmul.mubr.f32.gmra.mrb[0].mxu0 %v315
    %v596 = vpop.f32.mrb[0].mxu0
    %v597 = vadd.f32 %v295, %v596
    %v598 = vpop.f32.mrb[0].mxu0
    %v599 = vadd.f32 %v299, %v598
    %600 = vdwg.mxu0
    %601 = vmatprep.subr.mxu0 0.0
    %602 = vmatpush1.msra.mxu0 %v218
    %603 = vmatprep.subr.mxu0 0.0
    %604 = vmatpush1.msra.mxu0 %v227
    %605 = vmatprep.subr.mxu0 0.0
    %606 = vmatpush1.msra.mxu0 %v236
    %607 = vmatprep.subr.mxu0 0.0
    %608 = vmatpush1.msra.mxu0 %v245
    %609 = vmatprep.subr.mxu0 0.0
    %610 = vmatpush1.msra.mxu0 %v254
    %611 = vmatprep.subr.mxu0 0.0
    %612 = vmatpush1.msra.mxu0 %v263
    %613 = vmatprep.subr.mxu0 0.0
    %614 = vmatpush1.msra.mxu0 0.0
    %615 = vmatprep.subr.mxu0 0.0
    %616 = vmatpush1.msra.mxu0 0.0
    %617 = vmatprep.subr.mxu0 0.0
    %618 = vmatpush1.msra.mxu0 0.0
    %619 = vmatprep.subr.mxu0 0.0
    %620 = vmatpush1.msra.mxu0 0.0
    %621 = vmatprep.subr.mxu0 0.0
    %622 = vmatpush1.msra.mxu0 0.0
    %623 = vmatprep.subr.mxu0 0.0
    %624 = vmatpush1.msra.mxu0 0.0
    %625 = vmatprep.subr.mxu0 0.0
    %626 = vmatpush1.msra.mxu0 0.0
    %627 = vmatprep.subr.mxu0 0.0
    %628 = vmatpush1.msra.mxu0 0.0
    %629 = vmatprep.subr.mxu0 0.0
    %630 = vmatpush1.msra.mxu0 0.0
    %631 = vmatprep.subr.mxu0 0.0
    %632 = vmatpush1.msra.mxu0 0.0
    %633 = vmatprep.subr.mxu0 0.0
    %634 = vmatpush1.msra.mxu0 0.0
    %635 = vmatprep.subr.mxu0 0.0
    %636 = vmatpush1.msra.mxu0 0.0
    %637 = vmatprep.subr.mxu0 0.0
    %638 = vmatpush1.msra.mxu0 0.0
    %639 = vmatprep.subr.mxu0 0.0
    %640 = vmatpush1.msra.mxu0 0.0
    %641 = vmatprep.subr.mxu0 0.0
    %642 = vmatpush1.msra.mxu0 0.0
    %643 = vmatprep.subr.mxu0 0.0
    %644 = vmatpush1.msra.mxu0 0.0
    %645 = vmatprep.subr.mxu0 0.0
    %646 = vmatpush1.msra.mxu0 0.0
    %647 = vmatprep.subr.mxu0 0.0
    %648 = vmatpush1.msra.mxu0 0.0
    %649 = vmatprep.subr.mxu0 0.0
    %650 = vmatpush1.msra.mxu0 0.0
    %651 = vmatprep.subr.mxu0 0.0
    %652 = vmatpush1.msra.mxu0 0.0
    %653 = vmatprep.subr.mxu0 0.0
    %654 = vmatpush1.msra.mxu0 0.0
    %655 = vmatprep.subr.mxu0 0.0
    %656 = vmatpush1.msra.mxu0 0.0
    %657 = vmatprep.subr.mxu0 0.0
    %658 = vmatpush1.msra.mxu0 0.0
    %659 = vmatprep.subr.mxu0 0.0
    %660 = vmatpush1.msra.mxu0 0.0
    %661 = vmatprep.subr.mxu0 0.0
    %662 = vmatpush1.msra.mxu0 0.0
    %663 = vmatprep.subr.mxu0 0.0
    %664 = vmatpush1.msra.mxu0 0.0
    %665 = vmatprep.mubr.f32.mxu0 0.0
    %666 = vmatmul.mubr.f32.gmra.mrb[0].mxu0 %v315
    %v667 = vpop.f32.mrb[0].mxu0
    %v668 = vadd.f32 %v303, %v667
    %v669 = vpop.f32.mrb[0].mxu0
    %670 = vdwg.mxu0
    %v671 = vadd.f32 %v384, %v457
    %v672 = vxor.u32 %v671, 2147483648
    %v673 = vmul.f32 %v672, 1.442695
    %v674 = vpow.pop %v673
    %v675 = vadd.f32 %v674, 1.0
    %v676 = vrcp.pop %v675
    %v677 = vmul.f32 1.0, %v676
    %v678 = vadd.f32 %v386, %v526
    %v679 = vxor.u32 %v678, 2147483648
    %v680 = vmul.f32 %v679, 1.442695
    %v681 = vpow.pop %v680
    %v682 = vadd.f32 %v681, 1.0
    %v683 = vrcp.pop %v682
    %v684 = vmul.f32 1.0, %v683
    %v685 = vmul.f32 %v677, %v528
    %v686 = vadd.f32 %v455, %v685
    %v687 = vtanh.pop %v686
    %v688 = vsub.f32 %v203, %v687
    %v689 = vmul.f32 %v684, %v688
    %v690 = vadd.f32 %v687, %v689
    %vm691 = vcmask 517120
    %692 = vst.msk [vmem:[#allocation8] sm:$0x3] %vm691, %v690
    %v693 = vld [vmem:[#allocation7] sm:$0xff]
    %v694 = vld [vmem:[#allocation7 + $0x8] sm:$0xff]
    %v695 = vld [vmem:[#allocation7 + $0x10] sm:$0xff]
    %v696 = vld [vmem:[#allocation7 + $0x18] sm:$0xff]
    %v697 = vld [vmem:[#allocation7 + $0x20] sm:$0xff]
    %v698 = vld [vmem:[#allocation7 + $0x28] sm:$0xff]
    %v699 = vld [vmem:[#allocation7 + $0x30] sm:$0xff]
    %v700 = vld [vmem:[#allocation7 + $0x38] sm:$0xff]
    %v701 = vld [vmem:[#allocation7 + $0x40] sm:$0xff]
    %v702 = vld [vmem:[#allocation7 + $0x48] sm:$0xff]
    %v703 = vld [vmem:[#allocation7 + $0x50] sm:$0xff]
    %v704 = vld [vmem:[#allocation7 + $0x58] sm:$0xff]
    %v705 = vld [vmem:[#allocation7 + $0x60] sm:$0xff]
    %v706 = vld [vmem:[#allocation7 + $0x68] sm:$0xff]
    %v707 = vld [vmem:[#allocation7 + $0x70] sm:$0xff]
    %v708 = vld [vmem:[#allocation7 + $0x78] sm:$0xff]
    %v709 = vld [vmem:[#allocation7 + $0x80] sm:$0xff]
    %v710 = vld [vmem:[#allocation7 + $0x88] sm:$0xff]
    %v711 = vld [vmem:[#allocation7 + $0x90] sm:$0xff]
    %v712 = vld [vmem:[#allocation7 + $0x98] sm:$0xff]
    %v713 = vld [vmem:[#allocation7 + $0xa0] sm:$0xff]
    %v714 = vld [vmem:[#allocation7 + $0xa8] sm:$0xff]
    %v715 = vld [vmem:[#allocation7 + $0xb0] sm:$0xff]
    %v716 = vld [vmem:[#allocation7 + $0xb8] sm:$0xff]
    %v717 = vld [vmem:[#allocation7 + $0xc0] sm:$0xff]
    %v718 = vld [vmem:[#allocation7 + $0xc8] sm:$0xff]
    %v719 = vld [vmem:[#allocation7 + $0xd0] sm:$0xff]
    %v720 = vld [vmem:[#allocation7 + $0xd8] sm:$0xff]
    %v721 = vld [vmem:[#allocation7 + $0xe0] sm:$0xff]
    %v722 = vld [vmem:[#allocation7 + $0xe8] sm:$0xff]
    %v723 = vld [vmem:[#allocation7 + $0xf0] sm:$0xff]
    %v724 = vld [vmem:[#allocation7 + $0xf8] sm:$0xff]
    %v725 = vld [vmem:[#allocation7 + $0x100] sm:$0xff]
    %v726 = vld [vmem:[#allocation7 + $0x108] sm:$0xff]
    %v727 = vld [vmem:[#allocation7 + $0x110] sm:$0xff]
    %v728 = vld [vmem:[#allocation7 + $0x118] sm:$0xff]
    %v729 = vld [vmem:[#allocation7 + $0x120] sm:$0xff]
    %v730 = vld [vmem:[#allocation7 + $0x128] sm:$0xff]
    %v731 = vld [vmem:[#allocation7 + $0x130] sm:$0xff]
    %v732 = vld [vmem:[#allocation7 + $0x138] sm:$0xff]
    %v733 = vld [vmem:[#allocation7 + $0x140] sm:$0xff]
    %v734 = vld [vmem:[#allocation7 + $0x148] sm:$0xff]
    %v735 = vld [vmem:[#allocation7 + $0x150] sm:$0xff]
    %v736 = vld [vmem:[#allocation7 + $0x158] sm:$0xff]
    %v737 = vld [vmem:[#allocation7 + $0x160] sm:$0xff]
    %v738 = vld [vmem:[#allocation7 + $0x168] sm:$0xff]
    %v739 = vld [vmem:[#allocation7 + $0x170] sm:$0xff]
    %v740 = vld [vmem:[#allocation7 + $0x178] sm:$0xff]
    %v741 = vld [vmem:[%s6] sm:$0x7]
    %v743 = vlaneseq
    %v744 = vshrl.u32 %v743, 7
    %v745 = vsub.s32 0, %v744
    %v746 = vrot.slane %v741, %v745
    %v747 = vlaneseq
    %v748 = vshrl.u32 %v747, 7
    %v749 = vsub.s32 1, %v748
    %v750 = vrot.slane %v741, %v749
    %v751 = vlaneseq
    %v752 = vshrl.u32 %v751, 7
    %v753 = vsub.s32 2, %v752
    %v754 = vrot.slane %v741, %v753
    %758 = vmatprep.subr.mxu0 %v694
    %759 = vmatpush1.msra.mxu0 %v693
    %760 = vmatprep.subr.mxu0 %v697
    %761 = vmatpush1.msra.mxu0 %v696
    %762 = vmatprep.subr.mxu0 %v700
    %763 = vmatpush1.msra.mxu0 %v699
    %764 = vmatprep.subr.mxu0 %v703
    %765 = vmatpush1.msra.mxu0 %v702
    %766 = vmatprep.subr.mxu0 %v706
    %767 = vmatpush1.msra.mxu0 %v705
    %768 = vmatprep.subr.mxu0 %v709
    %769 = vmatpush1.msra.mxu0 %v708
    %770 = vmatprep.subr.mxu0 %v712
    %771 = vmatpush1.msra.mxu0 %v711
    %772 = vmatprep.subr.mxu0 %v715
    %773 = vmatpush1.msra.mxu0 %v714
    %774 = vmatprep.subr.mxu0 %v718
    %775 = vmatpush1.msra.mxu0 %v717
    %776 = vmatprep.subr.mxu0 %v721
    %777 = vmatpush1.msra.mxu0 %v720
    %778 = vmatprep.subr.mxu0 %v724
    %779 = vmatpush1.msra.mxu0 %v723
    %780 = vmatprep.subr.mxu0 %v727
    %781 = vmatpush1.msra.mxu0 %v726
    %782 = vmatprep.subr.mxu0 %v730
    %783 = vmatpush1.msra.mxu0 %v729
    %784 = vmatprep.subr.mxu0 %v733
    %785 = vmatpush1.msra.mxu0 %v732
    %786 = vmatprep.subr.mxu0 %v736
    %787 = vmatpush1.msra.mxu0 %v735
    %788 = vmatprep.subr.mxu0 %v739
    %789 = vmatpush1.msra.mxu0 %v738
    %790 = vmatprep.subr.mxu0 0.0
    %791 = vmatpush1.msra.mxu0 0.0
    %792 = vmatprep.subr.mxu0 0.0
    %793 = vmatpush1.msra.mxu0 0.0
    %794 = vmatprep.subr.mxu0 0.0
    %795 = vmatpush1.msra.mxu0 0.0
    %796 = vmatprep.subr.mxu0 0.0
    %797 = vmatpush1.msra.mxu0 0.0
    %798 = vmatprep.subr.mxu0 0.0
    %799 = vmatpush1.msra.mxu0 0.0
    %800 = vmatprep.subr.mxu0 0.0
    %801 = vmatpush1.msra.mxu0 0.0
    %802 = vmatprep.subr.mxu0 0.0
    %803 = vmatpush1.msra.mxu0 0.0
    %804 = vmatprep.subr.mxu0 0.0
    %805 = vmatpush1.msra.mxu0 0.0
    %806 = vmatprep.subr.mxu0 0.0
    %807 = vmatpush1.msra.mxu0 0.0
    %808 = vmatprep.subr.mxu0 0.0
    %809 = vmatpush1.msra.mxu0 0.0
    %810 = vmatprep.subr.mxu0 0.0
    %811 = vmatpush1.msra.mxu0 0.0
    %812 = vmatprep.subr.mxu0 0.0
    %813 = vmatpush1.msra.mxu0 0.0
    %814 = vmatprep.subr.mxu0 0.0
    %815 = vmatpush1.msra.mxu0 0.0
    %816 = vmatprep.subr.mxu0 0.0
    %817 = vmatpush1.msra.mxu0 0.0
    %818 = vmatprep.subr.mxu0 0.0
    %819 = vmatpush1.msra.mxu0 0.0
    %820 = vmatprep.subr.mxu0 0.0
    %821 = vmatpush1.msra.mxu0 0.0
    %822 = vmatprep.mubr.f32.mxu0 0.0
    %823 = vmatmul.mubr.f32.gmra.mrb[0].mxu0 %v690
    %v824 = vpop.f32.mrb[0].mxu0
    %v825 = vadd.f32 %v746, %v824
    %v826 = vpop.f32.mrb[0].mxu0
    %v827 = vadd.f32 %v750, %v826
    %828 = vdwg.mxu0
    %829 = vmatprep.subr.mxu0 0.0
    %830 = vmatpush1.msra.mxu0 %v695
    %831 = vmatprep.subr.mxu0 0.0
    %832 = vmatpush1.msra.mxu0 %v698
    %833 = vmatprep.subr.mxu0 0.0
    %834 = vmatpush1.msra.mxu0 %v701
    %835 = vmatprep.subr.mxu0 0.0
    %836 = vmatpush1.msra.mxu0 %v704
    %837 = vmatprep.subr.mxu0 0.0
    %838 = vmatpush1.msra.mxu0 %v707
    %839 = vmatprep.subr.mxu0 0.0
    %840 = vmatpush1.msra.mxu0 %v710
    %841 = vmatprep.subr.mxu0 0.0
    %842 = vmatpush1.msra.mxu0 %v713
    %843 = vmatprep.subr.mxu0 0.0
    %844 = vmatpush1.msra.mxu0 %v716
    %845 = vmatprep.subr.mxu0 0.0
    %846 = vmatpush1.msra.mxu0 %v719
    %847 = vmatprep.subr.mxu0 0.0
    %848 = vmatpush1.msra.mxu0 %v722
    %849 = vmatprep.subr.mxu0 0.0
    %850 = vmatpush1.msra.mxu0 %v725
    %851 = vmatprep.subr.mxu0 0.0
    %852 = vmatpush1.msra.mxu0 %v728
    %853 = vmatprep.subr.mxu0 0.0
    %854 = vmatpush1.msra.mxu0 %v731
    %855 = vmatprep.subr.mxu0 0.0
    %856 = vmatpush1.msra.mxu0 %v734
    %857 = vmatprep.subr.mxu0 0.0
    %858 = vmatpush1.msra.mxu0 %v737
    %859 = vmatprep.subr.mxu0 0.0
    %860 = vmatpush1.msra.mxu0 %v740
    %861 = vmatprep.subr.mxu0 0.0
    %862 = vmatpush1.msra.mxu0 0.0
    %863 = vmatprep.subr.mxu0 0.0
    %864 = vmatpush1.msra.mxu0 0.0
    %865 = vmatprep.subr.mxu0 0.0
    %866 = vmatpush1.msra.mxu0 0.0
    %867 = vmatprep.subr.mxu0 0.0
    %868 = vmatpush1.msra.mxu0 0.0
    %869 = vmatprep.subr.mxu0 0.0
    %870 = vmatpush1.msra.mxu0 0.0
    %871 = vmatprep.subr.mxu0 0.0
    %872 = vmatpush1.msra.mxu0 0.0
    %873 = vmatprep.subr.mxu0 0.0
    %874 = vmatpush1.msra.mxu0 0.0
    %875 = vmatprep.subr.mxu0 0.0
    %876 = vmatpush1.msra.mxu0 0.0
    %877 = vmatprep.subr.mxu0 0.0
    %878 = vmatpush1.msra.mxu0 0.0
    %879 = vmatprep.subr.mxu0 0.0
    %880 = vmatpush1.msra.mxu0 0.0
    %881 = vmatprep.subr.mxu0 0.0
    %882 = vmatpush1.msra.mxu0 0.0
    %883 = vmatprep.subr.mxu0 0.0
    %884 = vmatpush1.msra.mxu0 0.0
    %885 = vmatprep.subr.mxu0 0.0
    %886 = vmatpush1.msra.mxu0 0.0
    %887 = vmatprep.subr.mxu0 0.0
    %888 = vmatpush1.msra.mxu0 0.0
    %889 = vmatprep.subr.mxu0 0.0
    %890 = vmatpush1.msra.mxu0 0.0
    %891 = vmatprep.subr.mxu0 0.0
    %892 = vmatpush1.msra.mxu0 0.0
    %893 = vmatprep.mubr.f32.mxu0 0.0
    %894 = vmatmul.mubr.f32.gmra.mrb[0].mxu0 %v690
    %v895 = vpop.f32.mrb[0].mxu0
    %v896 = vadd.f32 %v754, %v895
    %v897 = vpop.f32.mrb[0].mxu0
    %898 = vdwg.mxu0
    %v899 = vadd.f32 %v825, %v597
    %v900 = vxor.u32 %v899, 2147483648
    %v901 = vmul.f32 %v900, 1.442695
    %v902 = vpow.pop %v901
    %v903 = vadd.f32 %v902, 1.0
    %v904 = vrcp.pop %v903
    %v905 = vmul.f32 1.0, %v904
    %v906 = vadd.f32 %v827, %v599
    %v907 = vxor.u32 %v906, 2147483648
    %v908 = vmul.f32 %v907, 1.442695
    %v909 = vpow.pop %v908
    %v910 = vadd.f32 %v909, 1.0
    %v911 = vrcp.pop %v910
    %v912 = vmul.f32 1.0, %v911
    %v913 = vmul.f32 %v905, %v668
    %v914 = vadd.f32 %v896, %v913
    %v915 = vtanh.pop %v914
    %v916 = vsub.f32 %v203, %v915
    %v917 = vmul.f32 %v912, %v916
    %v918 = vadd.f32 %v915, %v917
    %920 = vrot.lane.b32.xlu0 %v918, 64
    %v921 = vpop.permute.xlu0 %920
    %vm923 = vcmask 1041920
    %924 = vst.msk [vmem:[#allocation8] sm:$0x3] %vm923, %v921
    // Predicated region
    $region42: #{tpu_custom_call.1} parent=1 // pred_check
      _
    $region43: #{tpu_custom_call.1} parent=1 // pred_check_branch
      %926 = sbr.rel (0) target = $region45
    $region44: #{tpu_custom_call.1} parent=1 // pred_region
      %s928 = ssub.s32 32, 32
      %929 = vsyncadd [#allocation4], %s928
      %s931 = sshll.u32 [#allocation8], 4
      %s932 = int_to_ptr.vmem [resolvable:$true] %s931
      %934 = dma.vmem_to_hbm [thread:$0]  %s932, 32, %s7, [#allocation4]
    $region45: #{tpu_custom_call.1} parent=1 // pred_fallthru
      _
    // Predicated region
    $region46: #{tpu_custom_call.1} parent=1 // pred_check
      _
    $region47: #{tpu_custom_call.1} parent=1 // pred_check_branch
      %936 = sbr.rel (0) target = $region49
    $region48: #{tpu_custom_call.1} parent=1 // pred_region
      %937 = dma.done [#allocation4], 32
    $region49: #{tpu_custom_call.1} parent=1 // pred_fallthru
      _
    %938 = vsyncpa [#allocation3], 1
    %939 = vsyncpa [#allocation6], 1
    %940 = vsyncpa [#allocation4], 1

</llo_original>
